<compile_context>
chip_gen: v5e
topology: v5e:2x2
jax: 0.10.0
libtpu: 0.0.40
codegen_flags: <defaults>
</compile_context>

<pallas_src>
import functools

import jax
import jax.numpy as jnp
from jax.experimental import pallas as pl
from jax.experimental.pallas import tpu as pltpu

LN_EPS = 1e-5  # torch.nn.LayerNorm default


def _round_up(x, m):
    return (x + m - 1) // m * m


def _linear_layer_kernel(x_ref, gamma_ref, beta_ref, w_ref, b_ref, o_ref,
                         *, layer_norm: bool, relu: bool):
    # x_ref:     (tile_m, D_in)   rows tile
    # gamma/beta (1, D_in)        LN params (constant across grid)
    # w_ref:     (D_in, tile_n)   weight column tile
    # b_ref:     (1, tile_n)      bias column tile
    # o_ref:     (tile_m, tile_n) output tile
    x = x_ref[...]

    if layer_norm:
        xf = x.astype(jnp.float32)
        mean = jnp.mean(xf, axis=-1, keepdims=True)
        xc = xf - mean
        var = jnp.mean(xc * xc, axis=-1, keepdims=True)
        inv = jax.lax.rsqrt(var + LN_EPS)
        gamma = gamma_ref[...].astype(jnp.float32)   # hoisted single read/cast
        beta = beta_ref[...].astype(jnp.float32)
        xn = xc * inv * gamma + beta
        # Feed the MXU in the input dtype (bf16 stays bf16); stats stayed in f32.
        x = xn.astype(x_ref.dtype)

    # TODO(synk): dropout is identity in eval mode; train-mode masking would need pltpu.prng_*.

    y = jnp.dot(x, w_ref[...], preferred_element_type=jnp.float32)
    y = y + b_ref[...].astype(jnp.float32)

    if relu:
        y = jnp.maximum(y, 0.0)

    o_ref[...] = y.astype(o_ref.dtype)


def linear_layer_forward(x, gamma, beta, weight, bias,
                         *, layer_norm=True, relu=True,
                         tile_m=None, tile_n=None):
    """x: (N, L, D_in) -> (N, L, D_out). weight is stored (D_in, D_out) (i.e. torch W.T)."""
    N, L, d_in = x.shape
    d_out = weight.shape[1]
    M = N * L
    dtype = x.dtype
    itemsize = jnp.dtype(dtype).itemsize
    w_itemsize = jnp.dtype(weight.dtype).itemsize

    # Row-tile granularity: 8 sublanes for 32-bit, 16 for 16-bit packed dtypes.
    row_g = 8 if itemsize >= 4 else (16 if itemsize == 2 else 32)

    # --- pick tiles ---------------------------------------------------------
    if tile_m is None:
        tile_m = min(512, _round_up(M, row_g))        # big row tiles, but no bigger than needed
    tile_m = _round_up(tile_m, row_g)
    M_pad = _round_up(M, tile_m)

    d_out_pad = _round_up(d_out, 128)                 # lane-dense output
    if tile_n is None:
        tile_n = 128
        for cand in (512, 256, 128):
            if d_out_pad % cand == 0:
                tile_n = cand
                break
    assert d_out_pad % tile_n == 0

    # --- pad operands -------------------------------------------------------
    x2 = x.reshape(M, d_in)
    if M_pad != M:
        x2 = jnp.pad(x2, ((0, M_pad - M), (0, 0)))
    gamma2 = gamma.reshape(1, d_in)
    beta2 = beta.reshape(1, d_in)
    w2 = weight
    b2 = bias.reshape(1, d_out)
    if d_out_pad != d_out:
        w2 = jnp.pad(w2, ((0, 0), (0, d_out_pad - d_out)))     # zero cols -> padded lanes stay 0
        b2 = jnp.pad(b2, ((0, 0), (0, d_out_pad - d_out)))

    grid = (M_pad // tile_m, d_out_pad // tile_n)

    # --- VMEM budget (double-buffered tiles + f32 temporaries), with headroom ---
    vmem_needed = (2 * (tile_m * d_in * itemsize
                        + d_in * tile_n * w_itemsize
                        + tile_m * tile_n * itemsize)
                   + 4 * tile_m * (d_in + tile_n))   # rough f32 LN / acc temporaries
    vmem_limit = int(min(max(2 * vmem_needed, 32 << 20), 96 << 20))

    cost = pl.CostEstimate(
        flops=2 * M * d_in * d_out,
        transcendentals=M if layer_norm else 0,
        bytes_accessed=(M * d_in * itemsize + d_in * d_out * w_itemsize
                        + M * d_out * itemsize + 2 * d_in * 4 + d_out * 4),
    )

    kernel = functools.partial(_linear_layer_kernel, layer_norm=layer_norm, relu=relu)

    out2 = pl.pallas_call(
        kernel,
        out_shape=jax.ShapeDtypeStruct((M_pad, d_out_pad), dtype),
        grid_spec=pltpu.PrefetchScalarGridSpec(
            num_scalar_prefetch=0,
            grid=grid,
            in_specs=[
                pl.BlockSpec((tile_m, d_in), lambda i, j: (i, 0)),    # x rows
                pl.BlockSpec((1, d_in), lambda i, j: (0, 0)),         # gamma
                pl.BlockSpec((1, d_in), lambda i, j: (0, 0)),         # beta
                pl.BlockSpec((d_in, tile_n), lambda i, j: (0, j)),    # weight column tile
                pl.BlockSpec((1, tile_n), lambda i, j: (0, j)),       # bias column tile
            ],
            out_specs=pl.BlockSpec((tile_m, tile_n), lambda i, j: (i, j)),
        ),
        compiler_params=pltpu.CompilerParams(
            dimension_semantics=("parallel", "parallel"),
            vmem_limit_bytes=vmem_limit,
        ),
        cost_estimate=cost,
    )(x2, gamma2, beta2, w2, b2)

    return out2[:M, :d_out].reshape(N, L, d_out)


def reference_forward(x, gamma, beta, weight, bias, *, layer_norm=True, relu=True):
    x = x.astype(jnp.float32)
    if layer_norm:
        mean = jnp.mean(x, axis=-1, keepdims=True)
        var = jnp.mean((x - mean) ** 2, axis=-1, keepdims=True)
        x = (x - mean) * jax.lax.rsqrt(var + LN_EPS) * gamma + beta
    y = x @ weight.astype(jnp.float32) + bias
    if relu:
        y = jnp.maximum(y, 0.0)
    return y


def _make_params(key, in_hsz, out_hsz):
    k_w, k_b = jax.random.split(key, 2)
    gamma = jnp.ones((in_hsz,), jnp.float32)            # nn.LayerNorm weight init
    beta = jnp.zeros((in_hsz,), jnp.float32)            # nn.LayerNorm bias init
    bound = 1.0 / jnp.sqrt(in_hsz)
    weight = jax.random.uniform(k_w, (in_hsz, out_hsz), jnp.float32, -bound, bound)
    bias = jax.random.uniform(k_b, (out_hsz,), jnp.float32, -bound, bound)
    return gamma, beta, weight, bias


if __name__ == "__main__":
    key = jax.random.PRNGKey(0)

    # Test 1: shapes implied by the module (N, L, D) with hidden 32.
    N, L, in_hsz, out_hsz = 2, 8, 32, 32
    k_x, k_p = jax.random.split(key, 2)
    x = jax.random.normal(k_x, (N, L, in_hsz), dtype=jnp.float32)
    gamma, beta, weight, bias = _make_params(k_p, in_hsz, out_hsz)

    out = linear_layer_forward(x, gamma, beta, weight, bias, layer_norm=True, relu=True)
    out = jax.block_until_ready(out)
    ref = reference_forward(x, gamma, beta, weight, bias, layer_norm=True, relu=True)
    assert out.shape == (N, L, out_hsz)
    assert jnp.allclose(out, ref, atol=1e-4, rtol=1e-4), "mismatch vs reference (test 1)"

    # Test 2: ragged shapes exercising row padding and output-lane padding/slicing.
    N2, L2, in2, out2_h = 2, 7, 48, 40
    k_x2, k_p2 = jax.random.split(jax.random.PRNGKey(1), 2)
    x2 = jax.random.normal(k_x2, (N2, L2, in2), dtype=jnp.float32)
    g2, b2, w2, bi2 = _make_params(k_p2, in2, out2_h)

    out_b = linear_layer_forward(x2, g2, b2, w2, bi2, layer_norm=True, relu=True)
    out_b = jax.block_until_ready(out_b)
    ref_b = reference_forward(x2, g2, b2, w2, bi2, layer_norm=True, relu=True)
    assert out_b.shape == (N2, L2, out2_h)
    assert jnp.allclose(out_b, ref_b, atol=1e-4, rtol=1e-4), "mismatch vs reference (test 2)"

    print("KERNEL_OK")
</pallas_src>

<mosaic_0001>
module attributes {stable_mosaic.version = 11 : i64} {
  func.func @_linear_layer_kernel(%arg0: i32, %arg1: i32, %arg2: memref<16x32xf32, #tpu.memory_space<vmem>>, %arg3: memref<1x32xf32, #tpu.memory_space<vmem>>, %arg4: memref<1x32xf32, #tpu.memory_space<vmem>>, %arg5: memref<32x128xf32, #tpu.memory_space<vmem>>, %arg6: memref<1x128xf32, #tpu.memory_space<vmem>>, %arg7: memref<16x128xf32, #tpu.memory_space<vmem>>) attributes {dimension_semantics = [#tpu.dimension_semantics<parallel>, #tpu.dimension_semantics<parallel>], iteration_bounds = array<i64: 1, 1>, scalar_prefetch = 0 : i64, scratch_operands = 0 : i64, tpu.core_type = #tpu.core_type<tc>, window_params = [{transform_indices = @transform_0, window_bounds = array<i64: 16, 32>}, {pipeline_mode = #tpu.pipeline_mode<synchronous>, transform_indices = @transform_1, window_bounds = array<i64: 1, 32>}, {pipeline_mode = #tpu.pipeline_mode<synchronous>, transform_indices = @transform_2, window_bounds = array<i64: 1, 32>}, {transform_indices = @transform_3, window_bounds = array<i64: 32, 128>}, {transform_indices = @transform_4, window_bounds = array<i64: 1, 128>}, {transform_indices = @transform_5, window_bounds = array<i64: 16, 128>}]} {
    %c0 = arith.constant 0 : index
    %c0_0 = arith.constant 0 : index
    %0 = vector.load %arg2[%c0, %c0_0] : memref<16x32xf32, #tpu.memory_space<vmem>>, vector<16x32xf32>
    %cst = arith.constant dense<0.000000e+00> : vector<16xf32>
    %1 = vector.multi_reduction <add>, %0, %cst [1] : vector<16x32xf32> to vector<16xf32>
    %2 = vector.shape_cast %1 : vector<16xf32> to vector<16x1xf32>
    %cst_1 = arith.constant 3.200000e+01 : f32
    %3 = vector.broadcast %cst_1 : f32 to vector<16x1xf32>
    %4 = arith.divf %2, %3 : vector<16x1xf32>
    %5 = vector.broadcast %4 : vector<16x1xf32> to vector<16x32xf32>
    %6 = arith.subf %0, %5 : vector<16x32xf32>
    %7 = arith.mulf %6, %6 : vector<16x32xf32>
    %cst_2 = arith.constant dense<0.000000e+00> : vector<16xf32>
    %8 = vector.multi_reduction <add>, %7, %cst_2 [1] : vector<16x32xf32> to vector<16xf32>
    %9 = vector.shape_cast %8 : vector<16xf32> to vector<16x1xf32>
    %cst_3 = arith.constant 3.200000e+01 : f32
    %10 = vector.broadcast %cst_3 : f32 to vector<16x1xf32>
    %11 = arith.divf %9, %10 : vector<16x1xf32>
    %cst_4 = arith.constant 9.99999974E-6 : f32
    %12 = vector.broadcast %cst_4 : f32 to vector<16x1xf32>
    %13 = arith.addf %11, %12 : vector<16x1xf32>
    %14 = math.rsqrt %13 : vector<16x1xf32>
    %c0_5 = arith.constant 0 : index
    %c0_6 = arith.constant 0 : index
    %15 = vector.load %arg3[%c0_5, %c0_6] : memref<1x32xf32, #tpu.memory_space<vmem>>, vector<1x32xf32>
    %c0_7 = arith.constant 0 : index
    %c0_8 = arith.constant 0 : index
    %16 = vector.load %arg4[%c0_7, %c0_8] : memref<1x32xf32, #tpu.memory_space<vmem>>, vector<1x32xf32>
    %17 = vector.broadcast %14 : vector<16x1xf32> to vector<16x32xf32>
    %18 = arith.mulf %6, %17 : vector<16x32xf32>
    %19 = vector.broadcast %15 : vector<1x32xf32> to vector<16x32xf32>
    %20 = arith.mulf %18, %19 : vector<16x32xf32>
    %21 = vector.broadcast %16 : vector<1x32xf32> to vector<16x32xf32>
    %22 = arith.addf %20, %21 : vector<16x32xf32>
    %c0_9 = arith.constant 0 : index
    %c0_10 = arith.constant 0 : index
    %23 = vector.load %arg5[%c0_9, %c0_10] : memref<32x128xf32, #tpu.memory_space<vmem>>, vector<32x128xf32>
    %cst_11 = arith.constant dense<0.000000e+00> : vector<16x128xf32>
    %24 = tpu.matmul %22, %23, %cst_11 {dimension_numbers = #tpu.dot_dimension_numbers<[1], [0], [0], [1], [0, 0, 1, 1], [], []>} : vector<16x32xf32>, vector<32x128xf32>, vector<16x128xf32> -> vector<16x128xf32>
    %c0_12 = arith.constant 0 : index
    %c0_13 = arith.constant 0 : index
    %25 = vector.load %arg6[%c0_12, %c0_13] : memref<1x128xf32, #tpu.memory_space<vmem>>, vector<1x128xf32>
    %26 = vector.broadcast %25 : vector<1x128xf32> to vector<16x128xf32>
    %27 = arith.addf %24, %26 : vector<16x128xf32>
    %cst_14 = arith.constant 0.000000e+00 : f32
    %28 = vector.broadcast %cst_14 : f32 to vector<16x128xf32>
    %29 = arith.maximumf %27, %28 : vector<16x128xf32>
    %c0_15 = arith.constant 0 : index
    %c0_16 = arith.constant 0 : index
    %30 = vector.load %arg7[%c0_15, %c0_16] : memref<16x128xf32, #tpu.memory_space<vmem>>, vector<16x128xf32>
    tpu.vector_store %arg7[%c0_15, %c0_16], %29 {strides = array<i32>} : memref<16x128xf32, #tpu.memory_space<vmem>>, vector<16x128xf32>,
    return
  }
  func.func @transform_0(%arg0: i32, %arg1: i32) -> (i32, i32) {
    %c0_i32 = arith.constant 0 : i32
    %c0_i32_0 = arith.constant 0 : i32
    return %arg0, %c0_i32 : i32, i32
  }
  func.func @transform_1(%arg0: i32, %arg1: i32) -> (i32, i32) {
    %c0_i32 = arith.constant 0 : i32
    %c0_i32_0 = arith.constant 0 : i32
    %c0_i32_1 = arith.constant 0 : i32
    return %c0_i32, %c0_i32_0 : i32, i32
  }
  func.func @transform_2(%arg0: i32, %arg1: i32) -> (i32, i32) {
    %c0_i32 = arith.constant 0 : i32
    %c0_i32_0 = arith.constant 0 : i32
    %c0_i32_1 = arith.constant 0 : i32
    return %c0_i32, %c0_i32_0 : i32, i32
  }
  func.func @transform_3(%arg0: i32, %arg1: i32) -> (i32, i32) {
    %c0_i32 = arith.constant 0 : i32
    %c0_i32_0 = arith.constant 0 : i32
    return %c0_i32, %arg1 : i32, i32
  }
  func.func @transform_4(%arg0: i32, %arg1: i32) -> (i32, i32) {
    %c0_i32 = arith.constant 0 : i32
    %c0_i32_0 = arith.constant 0 : i32
    return %c0_i32, %arg1 : i32, i32
  }
  func.func @transform_5(%arg0: i32, %arg1: i32) -> (i32, i32) {
    %c0_i32 = arith.constant 0 : i32
    return %arg0, %arg1 : i32, i32
  }
}

</mosaic_0001>

<llo_original>
// kernel: tpu_custom_call.1
$region0: #{tpu_custom_call.1}
  #allocation0 [shape = 'u32[]', space=smem, size = 0x4, offset = 0x4, fixed_abs, tag = 'smem constant byte address 0x4 - core index']
  #allocation1 [shape = 'u32[72,128]{1,0:T(1,128)}', space=vmem, size = 0x9000, scoped, tag = 'internal scratch']
  %s0 = inlined_call_operand.hbm [shape: f32[16,32], index: 0, kind: input, shape index: {}]
  %s1 = inlined_call_operand.hbm [shape: f32[1,32], index: 1, kind: input, shape index: {}]
  %s2 = inlined_call_operand.vmem [shape: f32[1,32], index: 2, kind: input, shape index: {}]
  %s3 = inlined_call_operand.hbm [shape: f32[32,128], index: 3, kind: input, shape index: {}]
  %s4 = inlined_call_operand.vmem [shape: f32[1,128], index: 4, kind: input, shape index: {}]
  %s5 = inlined_call_operand.hbm [shape: f32[16,128], index: 5, kind: output, shape index: {}]
  %s6 = sld [smem:[#allocation0]]
  $region42: #{tpu_custom_call.1} parent=0
    _
  %s8 = ssub.s32 1, %s6
  %s9 = scalar_select 0, %s8, %s6
  $region1: #{tpu_custom_call.1} parent=0
    #allocation2 [shape = 'u8[8192]{0}', space=vmem, size = 0x2000, scoped, tag = 'input window, operand 0, single buffered']
    #allocation3 [shape = 's32[1]{0}', space=sflag, size = 0x4, scoped, tag = 'scoped memory for tpu_custom_call.1']
    #allocation4 [shape = 's32[1]{0}', space=sflag, size = 0x4, scoped, tag = 'scoped memory for tpu_custom_call.1']
    #allocation5 [shape = 'u8[512]{0}', space=vmem, size = 0x400, scoped, tag = 'input window, operand 1, single buffered']
    #allocation6 [shape = 's32[1]{0}', space=sflag, size = 0x4, scoped, tag = 'scoped memory for tpu_custom_call.1']
    #allocation7 [shape = 'u8[16384]{0}', space=vmem, size = 0x4000, scoped, tag = 'input window, operand 3, single buffered']
    #allocation8 [shape = 'u8[8192]{0}', space=vmem, size = 0x2000, scoped, tag = 'output window, operand 0, single buffered']
    %10 = vsyncpa [#allocation3], 0
    %11 = vsyncpa [#allocation6], 0
    %12 = vsyncpa [#allocation4], 0
    // Predicated region
    $region2: #{tpu_custom_call.1} parent=1 // pred_check
      _
    $region3: #{tpu_custom_call.1} parent=1 // pred_check_branch
      %14 = sbr.rel (0) target = $region5
    $region4: #{tpu_custom_call.1} parent=1 // pred_region
      %16 = vsyncadd [#allocation3], 0
      %s17 = sshll.u32 %s0, 4
      %s18 = int_to_ptr.hbm [resolvable:$true] %s17
      %s19 = sshll.u32 [#allocation2], 4
      %s20 = int_to_ptr.vmem [resolvable:$true] %s19
      %25 = dma.hbm_to_vmem [thread:$0]  %s18, 256, %s20, [#allocation3], 128, 128, 8
    $region5: #{tpu_custom_call.1} parent=1 // pred_fallthru
      _
    // Predicated region
    $region6: #{tpu_custom_call.1} parent=1 // pred_check
      _
    $region7: #{tpu_custom_call.1} parent=1 // pred_check_branch
      %27 = sbr.rel (0) target = $region9
    $region8: #{tpu_custom_call.1} parent=1 // pred_region
      %29 = vsyncadd [#allocation6], 0
      %s31 = sshll.u32 %s1, 4
      %s32 = int_to_ptr.hbm [resolvable:$true] %s31
      %s33 = sshll.u32 [#allocation5], 4
      %s34 = int_to_ptr.vmem [resolvable:$true] %s33
      %36 = dma.hbm_to_vmem [thread:$0]  %s32, 16, %s34, [#allocation6]
    $region9: #{tpu_custom_call.1} parent=1 // pred_fallthru
      _
    // Predicated region
    $region10: #{tpu_custom_call.1} parent=1 // pred_check
      _
    $region11: #{tpu_custom_call.1} parent=1 // pred_check_branch
      %38 = sbr.rel (0) target = $region13
    $region12: #{tpu_custom_call.1} parent=1 // pred_region
      _
    $region13: #{tpu_custom_call.1} parent=1 // pred_fallthru
      _
    // Predicated region
    $region14: #{tpu_custom_call.1} parent=1 // pred_check
      _
    $region15: #{tpu_custom_call.1} parent=1 // pred_check_branch
      %40 = sbr.rel (0) target = $region17
    $region16: #{tpu_custom_call.1} parent=1 // pred_region
      %42 = vsyncadd [#allocation6], 0
      %s43 = sshll.u32 %s3, 4
      %s44 = int_to_ptr.hbm [resolvable:$true] %s43
      %s45 = sshll.u32 [#allocation7], 4
      %s46 = int_to_ptr.vmem [resolvable:$true] %s45
      %51 = dma.hbm_to_vmem [thread:$0]  %s44, 512, %s46, [#allocation6], 128, 128, 8
    $region17: #{tpu_custom_call.1} parent=1 // pred_fallthru
      _
    // Predicated region
    $region18: #{tpu_custom_call.1} parent=1 // pred_check
      _
    $region19: #{tpu_custom_call.1} parent=1 // pred_check_branch
      %53 = sbr.rel (0) target = $region21
    $region20: #{tpu_custom_call.1} parent=1 // pred_region
      _
    $region21: #{tpu_custom_call.1} parent=1 // pred_fallthru
      _
    // Predicated region
    $region22: #{tpu_custom_call.1} parent=1 // pred_check
      _
    $region23: #{tpu_custom_call.1} parent=1 // pred_check_branch
      %55 = sbr.rel (0) target = $region25
    $region24: #{tpu_custom_call.1} parent=1 // pred_region
      %57 = dma.done [#allocation3], 256
    $region25: #{tpu_custom_call.1} parent=1 // pred_fallthru
      _
    // Predicated region
    $region26: #{tpu_custom_call.1} parent=1 // pred_check
      _
    $region27: #{tpu_custom_call.1} parent=1 // pred_check_branch
      %59 = sbr.rel (0) target = $region29
    $region28: #{tpu_custom_call.1} parent=1 // pred_region
      %61 = dma.done [#allocation6], 16
    $region29: #{tpu_custom_call.1} parent=1 // pred_fallthru
      _
    // Predicated region
    $region30: #{tpu_custom_call.1} parent=1 // pred_check
      _
    $region31: #{tpu_custom_call.1} parent=1 // pred_check_branch
      %63 = sbr.rel (0) target = $region33
    $region32: #{tpu_custom_call.1} parent=1 // pred_region
      %65 = dma.done [#allocation6], 512
    $region33: #{tpu_custom_call.1} parent=1 // pred_fallthru
      _
    %v66 = vld [vmem:[#allocation2] sm:$0xff]
    %v67 = vld [vmem:[#allocation2 + $0x8] sm:$0xff]
    %vm68 = vcmask 261120
    %v69 = vsel %vm68, %v66, 0.0
    %70 = vadd.xlane.f32.xlu0 %v69
    %v71 = vpop.xlane.xlu0 %70
    %v72 = vsel %vm68, %v67, 0.0
    %73 = vadd.xlane.f32.xlu0 %v72
    %v74 = vpop.xlane.xlu0 %73
    %v75 = vrcp.pop 32.0
    %v76 = vmul.f32 32.0, %v75
    %v77 = vsub.f32 1.0, %v76
    %v78 = vmul.f32 %v75, %v77
    %v79 = vadd.f32 %v75, %v78
    %vm80 = vweird.f32 %v75
    %v81 = vsel %vm80, %v75, %v79
    %v82 = vmul.f32 %v71, %v81
    %v83 = vmul.f32 %v74, %v81
    %v84 = vsub.f32 %v66, %v82
    %v85 = vsub.f32 %v67, %v83
    %v86 = vmul.f32 %v84, %v84
    %v87 = vmul.f32 %v85, %v85
    %v88 = vsel %vm68, %v86, 0.0
    %89 = vadd.xlane.f32.xlu0 %v88
    %v90 = vpop.xlane.xlu0 %89
    %v91 = vsel %vm68, %v87, 0.0
    %92 = vadd.xlane.f32.xlu0 %v91
    %v93 = vpop.xlane.xlu0 %92
    %v94 = vmul.f32 %v90, %v81
    %v95 = vmul.f32 %v93, %v81
    %v96 = vadd.f32 %v94, 1e-05
    %v97 = vadd.f32 %v95, 1e-05
    %v98 = vrsqrt.pop %v96
    %v99 = vmul.f32 %v98, %v96
    %v100 = vmul.f32 %v99, %v98
    %v101 = vmul.f32 0.5, %v100
    %v102 = vsub.f32 1.5, %v101
    %v103 = vmul.f32 %v98, %v102
    %vm104 = vweird.f32 %v96
    %vm105 = vweird.f32 %v98
    %vm106 = vmor %vm104, %vm105
    %v107 = vsel %vm106, %v98, %v103
    %v108 = vrsqrt.pop %v97
    %v109 = vmul.f32 %v108, %v97
    %v110 = vmul.f32 %v109, %v108
    %v111 = vmul.f32 0.5, %v110
    %v112 = vsub.f32 1.5, %v111
    %v113 = vmul.f32 %v108, %v112
    %vm114 = vweird.f32 %v97
    %vm115 = vweird.f32 %v108
    %vm116 = vmor %vm114, %vm115
    %v117 = vsel %vm116, %v108, %v113
    %v118 = vld [vmem:[#allocation5] sm:$0x1]
    %v119 = vld [vmem:[%s2] sm:$0x1]
    %v120 = vmul.f32 %v84, %v107
    %v121 = vmul.f32 %v85, %v117
    %v123 = vperm.slane %v118, 0
    %v125 = vmul.f32 %v120, %v123
    %v126 = vmul.f32 %v121, %v123
    %v128 = vperm.slane %v119, 0
    %v130 = vadd.f32 %v125, %v128
    %v131 = vadd.f32 %v126, %v128
    %v132 = vld [vmem:[#allocation7] sm:$0xff]
    %v133 = vld [vmem:[#allocation7 + $0x8] sm:$0xff]
    %v134 = vld [vmem:[#allocation7 + $0x10] sm:$0xff]
    %v135 = vld [vmem:[#allocation7 + $0x18] sm:$0xff]
    %v136 = vld [vmem:[%s4] sm:$0x1]
    %v138 = vperm.slane %v136, 0
    %v141 = vsel %vm68, %v130, 0
    %v144 = vsel %vm68, %v131, 0
    %146 = vmatpush.msra.mxu0 0.0
    %147 = vmatpush.msra.mxu0 0.0
    %148 = vmatpush.msra.mxu0 0.0
    %149 = vmatpush.msra.mxu0 0.0
    %150 = vmatpush.msra.mxu0 0.0
    %151 = vmatpush.msra.mxu0 0.0
    %152 = vmatpush.msra.mxu0 0.0
    %153 = vmatpush.msra.mxu0 0.0
    %154 = vmatpush.msra.mxu0 0.0
    %155 = vmatpush.msra.mxu0 0.0
    %156 = vmatpush.msra.mxu0 0.0
    %157 = vmatpush.msra.mxu0 0.0
    %158 = vmatpush.msra.mxu0 %v135
    %159 = vmatpush.msra.mxu0 %v134
    %160 = vmatpush.msra.mxu0 %v133
    %161 = vmatpush.msra.mxu0 %v132
    %162 = vmatmul.f32.gmra.mxu0 %v141
    %v163 = vpop.f32.mrf.mxu0
    %v164 = vadd.f32 %v138, %v163
    %165 = vmatmul.f32.gmra.mxu0 %v144
    %v166 = vpop.f32.mrf.mxu0
    %v167 = vadd.f32 %v138, %v166
    %168 = vdwg.mxu0
    %v169 = vmax.f32 %v164, 0.0
    %v170 = vmax.f32 %v167, 0.0
    %171 = vst [vmem:[#allocation8] sm:$0xff] %v169
    %172 = vst [vmem:[#allocation8 + $0x8] sm:$0xff] %v170
    // Predicated region
    $region34: #{tpu_custom_call.1} parent=1 // pred_check
      _
    $region35: #{tpu_custom_call.1} parent=1 // pred_check_branch
      %174 = sbr.rel (0) target = $region37
    $region36: #{tpu_custom_call.1} parent=1 // pred_region
      %176 = vsyncadd [#allocation4], 0
      %s177 = sshll.u32 [#allocation8], 4
      %s178 = int_to_ptr.vmem [resolvable:$true] %s177
      %s179 = sshll.u32 %s5, 4
      %s180 = int_to_ptr.hbm [resolvable:$true] %s179
      %185 = dma.vmem_to_hbm [thread:$0]  %s178, 256, %s180, [#allocation4], 128, 128, 8
    $region37: #{tpu_custom_call.1} parent=1 // pred_fallthru
      _
    // Predicated region
    $region38: #{tpu_custom_call.1} parent=1 // pred_check
      _
    $region39: #{tpu_custom_call.1} parent=1 // pred_check_branch
      %187 = sbr.rel (0) target = $region41
    $region40: #{tpu_custom_call.1} parent=1 // pred_region
      %189 = dma.done [#allocation4], 256
    $region41: #{tpu_custom_call.1} parent=1 // pred_fallthru
      _
    %190 = vsyncpa [#allocation3], 1
    %191 = vsyncpa [#allocation6], 1
    %192 = vsyncpa [#allocation4], 1

</llo_original>
